<compile_context>
chip_gen: v6e
topology: v6e:2x2x1
jax: 0.10.0
libtpu: 0.0.40
codegen_flags: <defaults>
</compile_context>

<pallas_src>
import functools

import jax
import jax.numpy as jnp
from jax.experimental import pallas as pl
from jax.experimental.pallas import tpu as pltpu


_LANE = 128
_MAX_TILE_N = 4096  # lane-dense output tile cap; keeps footprint v7x-safe


def _decoder_kernel(x_ref, wt_ref, b_ref, o_ref):
    # x_ref : (M, E)        activations (f32; cast to weight dtype in-kernel)
    # wt_ref: (E, TILE_N)   pre-transposed weight tile, lane-dense output axis
    # b_ref : (1, TILE_N)   bias tile (f32)
    # o_ref : (M, TILE_N)   output tile
    x = x_ref[...].astype(wt_ref.dtype)      # in-kernel cast: no extra XLA dispatch
    y = jnp.dot(x, wt_ref[...], preferred_element_type=jnp.float32)
    y = y + b_ref[...]                       # f32 epilogue (right call on v5e, free on v6e/v7x)
    o_ref[...] = jax.nn.sigmoid(y).astype(o_ref.dtype)


def make_toy_decoder_params(w, b, *, weight_dtype=jnp.float32):
    """One-time parameter prep (outside the hot path).

    w: (C*H*W, E)  torch nn.Linear.weight layout
    b: (C*H*W,)
    Returns (wt, b2): wt (E, C*H*W) in `weight_dtype` (lane-dense out axis),
    b2 (1, C*H*W) f32.  weight_dtype=jnp.bfloat16 halves weight DMA if the
    consumer tolerates the quantization.
    """
    wt = jnp.asarray(w, dtype=jnp.float32).T.astype(weight_dtype)
    b2 = jnp.asarray(b, dtype=jnp.float32).reshape(1, -1)
    return wt, b2


def _pick_tile_n(out_dim: int) -> int:
    """Largest lane-dense (multiple-of-128) tile dividing out_dim, capped at
    _MAX_TILE_N; falls back to a single full block (exempt from the (8,128)
    rule) when out_dim is small or has no such divisor."""
    if out_dim <= _MAX_TILE_N:
        return out_dim
    for t in range(_MAX_TILE_N, 0, -_LANE):
        if out_dim % t == 0:
            return t
    return out_dim


def _forward_2d(x2d, wt, b2, out_dtype):
    """Core Pallas call: (M, E) f32 activations -> (M, out_dim) sigmoid(x@wt+b)."""
    M, E = x2d.shape
    E_w, out_dim = wt.shape
    assert E == E_w, f"embed_dim mismatch: {E} vs {E_w}"
    assert b2.shape == (1, out_dim)

    tile_n = _pick_tile_n(out_dim)
    grid_n = out_dim // tile_n if out_dim % tile_n == 0 else 1
    if grid_n == 1:
        tile_n = out_dim

    out_itemsize = jnp.dtype(out_dtype).itemsize
    cost = pl.CostEstimate(
        flops=2 * M * E * out_dim,
        transcendentals=M * out_dim,
        bytes_accessed=(x2d.size * x2d.dtype.itemsize
                        + wt.size * wt.dtype.itemsize
                        + b2.size * b2.dtype.itemsize
                        + M * out_dim * out_itemsize),
    )

    # VMEM guard: activations resident + double-buffered weight/bias/out tiles.
    vmem_est = (2 * M * E * 4
                + 2 * (E * tile_n * wt.dtype.itemsize
                       + tile_n * 4
                       + M * tile_n * out_itemsize))
    cparams = {"dimension_semantics": ("parallel",)}  # lets v7x's 2 TCs split the N grid
    if vmem_est > 24 * 1024 * 1024:
        cparams["vmem_limit_bytes"] = min(int(vmem_est * 3 // 2), 60 * 1024 * 1024)

    return pl.pallas_call(
        _decoder_kernel,
        out_shape=jax.ShapeDtypeStruct((M, out_dim), out_dtype),
        grid=(grid_n,),
        in_specs=[
            pl.BlockSpec((M, E), lambda j: (0, 0)),        # activations (resident)
            pl.BlockSpec((E, tile_n), lambda j: (0, j)),   # weight tile (lane-dense)
            pl.BlockSpec((1, tile_n), lambda j: (0, j)),   # bias tile
        ],
        out_specs=pl.BlockSpec((M, tile_n), lambda j: (0, j)),
        compiler_params=pltpu.CompilerParams(**cparams),
        cost_estimate=cost,
    )(x2d, wt, b2)


@functools.partial(jax.jit, static_argnames=("channels", "image_size", "out_dtype"))
def toy_decoder_forward(embeddings, wt, b2, channels, image_size,
                        out_dtype=jnp.float32):
    """Pallas implementation of ToyDecoder.forward.

    embeddings: (B, E) or (B, 1, E) float32
    wt:         (E, C*H*W)  pre-transposed weight (f32 or bf16)
    b2:         (1, C*H*W)  bias (f32)
    returns:    (B, C, H, W) in out_dtype (default f32; bf16 if downstream
                accepts it — sigmoid output is in [0, 1])
    """
    if embeddings.ndim == 3:
        embeddings = jnp.squeeze(embeddings, axis=1)
    B = embeddings.shape[0]
    flat = _forward_2d(embeddings, wt, b2, out_dtype)
    # Row-major reshape matches torch's .view(B, C, H, W); zero-copy.
    return flat.reshape(B, channels, image_size, image_size)


@functools.partial(jax.jit, static_argnames=("channels", "image_size", "out_dtype"))
def toy_decoder_forward_batched(embeddings_bt, wt, b2, channels, image_size,
                                out_dtype=jnp.float32):
    """Timestep-batched variant: (B, T, E) -> (B, T, C, H, W).

    Stacks T world-model steps into one (B*T, E) kernel call, amortizing the
    ~µs fixed pallas_call/DMA cost T x and filling MXU rows.
    """
    B, T, E = embeddings_bt.shape
    flat = _forward_2d(embeddings_bt.reshape(B * T, E), wt, b2, out_dtype)
    return flat.reshape(B, T, channels, image_size, image_size)


# ----------------------------- references ---------------------------------

def _reference_forward_f32(embeddings, w, b, channels, image_size):
    """Exact f32 module semantics."""
    if embeddings.ndim == 3:
        embeddings = jnp.squeeze(embeddings, axis=1)
    y = jax.nn.sigmoid(embeddings @ w.T + b)
    return y.reshape(embeddings.shape[0], channels, image_size, image_size)


def _reference_forward_quantized(embeddings, wt, b2, channels, image_size):
    """Same math path as the kernel (weight-dtype operands, f32 accumulation)."""
    if embeddings.ndim == 3:
        embeddings = jnp.squeeze(embeddings, axis=1)
    x = embeddings.astype(wt.dtype).astype(jnp.float32)
    w = wt.astype(jnp.float32)
    y = jax.nn.sigmoid(x @ w + b2)
    return y.reshape(embeddings.shape[0], channels, image_size, image_size)


if __name__ == "__main__":
    # Small shapes consistent with the module: B=2, embed_dim=32, C=3, image=16.
    B, E = 2, 32
    channels, image_size = 3, 16
    out_dim = channels * image_size * image_size  # 768
    T = 8  # timesteps for the batched path

    key = jax.random.PRNGKey(0)
    k_x, k_w, k_b, k_seq = jax.random.split(key, 4)

    # Deterministic synthetic parameters / inputs (no checkpoint loading).
    embeddings = jax.random.normal(k_x, (B, 1, E), dtype=jnp.float32)   # (B, 1, E) path
    embeddings_seq = jax.random.normal(k_seq, (B, T, E), dtype=jnp.float32)
    w = jax.random.normal(k_w, (out_dim, E), dtype=jnp.float32) * 0.05
    b = jax.random.normal(k_b, (out_dim,), dtype=jnp.float32) * 0.05

    # ---- exact-semantics path: f32 weights (default) ----
    wt32, b2 = make_toy_decoder_params(w, b, weight_dtype=jnp.float32)
    out = jax.block_until_ready(
        toy_decoder_forward(embeddings, wt32, b2, channels, image_size))
    assert out.shape == (B, channels, image_size, image_size)
    ref_f32 = _reference_forward_f32(embeddings, w, b, channels, image_size)
    assert jnp.allclose(out, ref_f32, atol=2e-3, rtol=2e-3)

    # ---- timestep-batched path (amortizes the fixed kernel cost) ----
    out_seq = jax.block_until_ready(
        toy_decoder_forward_batched(embeddings_seq, wt32, b2, channels, image_size))
    assert out_seq.shape == (B, T, channels, image_size, image_size)
    ref_seq = jax.vmap(
        lambda e: _reference_forward_f32(e, w, b, channels, image_size),
        in_axes=1, out_axes=1)(embeddings_seq)
    assert jnp.allclose(out_seq, ref_seq, atol=2e-3, rtol=2e-3)

    # ---- optional bf16-weight path (halves weight DMA; intentional quantization) ----
    wt16, b2_16 = make_toy_decoder_params(w, b, weight_dtype=jnp.bfloat16)
    out_bf16 = jax.block_until_ready(
        toy_decoder_forward(embeddings, wt16, b2_16, channels, image_size))
    ref_q = _reference_forward_quantized(embeddings, wt16, b2_16, channels, image_size)
    assert jnp.allclose(out_bf16, ref_q, atol=1e-5, rtol=1e-5)       # same math path
    assert jnp.allclose(out_bf16, ref_f32, atol=3e-2, rtol=3e-2)     # vs f32 module semantics

    print("KERNEL_OK")
</pallas_src>

<mosaic_0001>
module attributes {stable_mosaic.version = 11 : i64} {
  func.func @_decoder_kernel(%arg0: i32, %arg1: memref<2x32xf32, #tpu.memory_space<vmem>>, %arg2: memref<32x768xf32, #tpu.memory_space<vmem>>, %arg3: memref<1x768xf32, #tpu.memory_space<vmem>>, %arg4: memref<2x768xf32, #tpu.memory_space<vmem>>) attributes {dimension_semantics = [#tpu.dimension_semantics<parallel>], iteration_bounds = array<i64: 1>, scalar_prefetch = 0 : i64, scratch_operands = 0 : i64, tpu.core_type = #tpu.core_type<tc>, window_params = [{pipeline_mode = #tpu.pipeline_mode<synchronous>, transform_indices = @transform_0, window_bounds = array<i64: 2, 32>}, {transform_indices = @transform_1, window_bounds = array<i64: 32, 768>}, {transform_indices = @transform_2, window_bounds = array<i64: 1, 768>}, {transform_indices = @transform_3, window_bounds = array<i64: 2, 768>}]} {
    %c0 = arith.constant 0 : index
    %c0_0 = arith.constant 0 : index
    %0 = vector.load %arg1[%c0, %c0_0] : memref<2x32xf32, #tpu.memory_space<vmem>>, vector<2x32xf32>
    %c0_1 = arith.constant 0 : index
    %c0_2 = arith.constant 0 : index
    %1 = vector.load %arg2[%c0_1, %c0_2] : memref<32x768xf32, #tpu.memory_space<vmem>>, vector<32x768xf32>
    %cst = arith.constant dense<0.000000e+00> : vector<2x768xf32>
    %2 = tpu.matmul %0, %1, %cst {dimension_numbers = #tpu.dot_dimension_numbers<[1], [0], [0], [1], [0, 0, 1, 1], [], []>} : vector<2x32xf32>, vector<32x768xf32>, vector<2x768xf32> -> vector<2x768xf32>
    %c0_3 = arith.constant 0 : index
    %c0_4 = arith.constant 0 : index
    %3 = vector.load %arg3[%c0_3, %c0_4] : memref<1x768xf32, #tpu.memory_space<vmem>>, vector<1x768xf32>
    %4 = vector.broadcast %3 : vector<1x768xf32> to vector<2x768xf32>
    %5 = arith.addf %2, %4 : vector<2x768xf32>
    %6 = arith.negf %5 : vector<2x768xf32>
    %7 = math.exp %6 : vector<2x768xf32>
    %cst_5 = arith.constant 1.000000e+00 : f32
    %8 = vector.broadcast %cst_5 : f32 to vector<2x768xf32>
    %9 = arith.addf %8, %7 : vector<2x768xf32>
    %10 = arith.divf %8, %9 : vector<2x768xf32>
    %c0_6 = arith.constant 0 : index
    %c0_7 = arith.constant 0 : index
    %11 = vector.load %arg4[%c0_6, %c0_7] : memref<2x768xf32, #tpu.memory_space<vmem>>, vector<2x768xf32>
    tpu.vector_store %arg4[%c0_6, %c0_7], %10 {strides = array<i32>} : memref<2x768xf32, #tpu.memory_space<vmem>>, vector<2x768xf32>,
    return
  }
  func.func @transform_0(%arg0: i32) -> (i32, i32) {
    %c0_i32 = arith.constant 0 : i32
    %c0_i32_0 = arith.constant 0 : i32
    %c0_i32_1 = arith.constant 0 : i32
    return %c0_i32, %c0_i32_0 : i32, i32
  }
  func.func @transform_1(%arg0: i32) -> (i32, i32) {
    %c0_i32 = arith.constant 0 : i32
    %c0_i32_0 = arith.constant 0 : i32
    return %c0_i32, %arg0 : i32, i32
  }
  func.func @transform_2(%arg0: i32) -> (i32, i32) {
    %c0_i32 = arith.constant 0 : i32
    %c0_i32_0 = arith.constant 0 : i32
    return %c0_i32, %arg0 : i32, i32
  }
  func.func @transform_3(%arg0: i32) -> (i32, i32) {
    %c0_i32 = arith.constant 0 : i32
    %c0_i32_0 = arith.constant 0 : i32
    return %c0_i32, %arg0 : i32, i32
  }
}

</mosaic_0001>

<llo_original>
// kernel: toy_decoder_forward.1
$region0: #{toy_decoder_forward.1}
  #allocation0 [shape = 'u32[]', space=smem, size = 0x4, offset = 0x4, fixed_abs, tag = 'smem constant byte address 0x4 - core index']
  #allocation1 [shape = 'u32[144,128]{1,0:T(1,128)}', space=vmem, size = 0x12000, scoped, tag = 'internal scratch']
  %s0 = inlined_call_operand.hbm [shape: f32[2,32], index: 0, kind: input, shape index: {}]
  %s1 = inlined_call_operand.hbm [shape: f32[32,768], index: 1, kind: input, shape index: {}]
  %s2 = inlined_call_operand.hbm [shape: f32[1,768], index: 2, kind: input, shape index: {}]
  %s3 = inlined_call_operand.vmem [shape: f32[2,768], index: 3, kind: output, shape index: {}]
  %s4 = sld [smem:[#allocation0]]
  $region34: #{toy_decoder_forward.1} parent=0
    _
  %s6 = ssub.s32 1, %s4
  %s7 = scalar_select 0, %s6, %s4
  $region1: #{toy_decoder_forward.1} parent=0
    #allocation2 [shape = 'u8[1024]{0}', space=vmem, size = 0x400, scoped, tag = 'input window, operand 0, single buffered']
    #allocation3 [shape = 's32[1]{0}', space=sflag, size = 0x4, scoped, tag = 'scoped memory for toy_decoder_forward.1']
    #allocation4 [shape = 'u8[98304]{0}', space=vmem, size = 0x18000, scoped, tag = 'input window, operand 1, single buffered']
    #allocation5 [shape = 's32[1]{0}', space=sflag, size = 0x4, scoped, tag = 'scoped memory for toy_decoder_forward.1']
    #allocation6 [shape = 'u8[3072]{0}', space=vmem, size = 0xc00, scoped, tag = 'input window, operand 2, single buffered']
    %8 = vsyncpa [#allocation3], 0
    %9 = vsyncpa [#allocation5], 0
    // Predicated region
    $region2: #{toy_decoder_forward.1} parent=1 // pred_check
      _
    $region3: #{toy_decoder_forward.1} parent=1 // pred_check_branch
      %11 = sbr.rel (0) target = $region5
    $region4: #{toy_decoder_forward.1} parent=1 // pred_region
      %s13 = ssub.s32 32, 32
      %14 = vsyncadd [#allocation3], %s13
      %s16 = sshll.u32 [#allocation2], 4
      %s17 = int_to_ptr.vmem [resolvable:$true] %s16
      %19 = dma.hbm_to_vmem [thread:$0]  %s0, 32, %s17, [#allocation3]
    $region5: #{toy_decoder_forward.1} parent=1 // pred_fallthru
      _
    // Predicated region
    $region6: #{toy_decoder_forward.1} parent=1 // pred_check
      _
    $region7: #{toy_decoder_forward.1} parent=1 // pred_check_branch
      %21 = sbr.rel (0) target = $region9
    $region8: #{toy_decoder_forward.1} parent=1 // pred_region
      %s23 = ssub.s32 3072, 3072
      %24 = vsyncadd [#allocation5], %s23
      %s25 = sshll.u32 [#allocation4], 4
      %s26 = int_to_ptr.vmem [resolvable:$true] %s25
      %31 = dma.hbm_to_vmem [thread:$0]  %s1, 3072, %s26, [#allocation5], 768, 768, 48
    $region9: #{toy_decoder_forward.1} parent=1 // pred_fallthru
      _
    // Predicated region
    $region10: #{toy_decoder_forward.1} parent=1 // pred_check
      _
    $region11: #{toy_decoder_forward.1} parent=1 // pred_check_branch
      %33 = sbr.rel (0) target = $region13
    $region12: #{toy_decoder_forward.1} parent=1 // pred_region
      %s35 = ssub.s32 96, 96
      %36 = vsyncadd [#allocation5], %s35
      %s38 = sshll.u32 [#allocation6], 4
      %s39 = int_to_ptr.vmem [resolvable:$true] %s38
      %41 = dma.hbm_to_vmem [thread:$0]  %s2, 96, %s39, [#allocation5]
    $region13: #{toy_decoder_forward.1} parent=1 // pred_fallthru
      _
    // Predicated region
    $region14: #{toy_decoder_forward.1} parent=1 // pred_check
      _
    $region15: #{toy_decoder_forward.1} parent=1 // pred_check_branch
      %43 = sbr.rel (0) target = $region17
    $region16: #{toy_decoder_forward.1} parent=1 // pred_region
      %44 = dma.done [#allocation3], 32
    $region17: #{toy_decoder_forward.1} parent=1 // pred_fallthru
      _
    // Predicated region
    $region18: #{toy_decoder_forward.1} parent=1 // pred_check
      _
    $region19: #{toy_decoder_forward.1} parent=1 // pred_check_branch
      %46 = sbr.rel (0) target = $region21
    $region20: #{toy_decoder_forward.1} parent=1 // pred_region
      %47 = dma.done [#allocation5], 3072
    $region21: #{toy_decoder_forward.1} parent=1 // pred_fallthru
      _
    // Predicated region
    $region22: #{toy_decoder_forward.1} parent=1 // pred_check
      _
    $region23: #{toy_decoder_forward.1} parent=1 // pred_check_branch
      %49 = sbr.rel (0) target = $region25
    $region24: #{toy_decoder_forward.1} parent=1 // pred_region
      %50 = dma.done [#allocation5], 96
    $region25: #{toy_decoder_forward.1} parent=1 // pred_fallthru
      _
    %v51 = vld [vmem:[#allocation2] sm:$0x3]
    %v52 = vld [vmem:[#allocation4] sm:$0xff]
    %v53 = vld [vmem:[#allocation4 + $0x8] sm:$0xff]
    %v54 = vld [vmem:[#allocation4 + $0x10] sm:$0xff]
    %v55 = vld [vmem:[#allocation4 + $0x18] sm:$0xff]
    %v56 = vld [vmem:[#allocation4 + $0x20] sm:$0xff]
    %v57 = vld [vmem:[#allocation4 + $0x28] sm:$0xff]
    %v58 = vld [vmem:[#allocation4 + $0x30] sm:$0xff]
    %v59 = vld [vmem:[#allocation4 + $0x38] sm:$0xff]
    %v60 = vld [vmem:[#allocation4 + $0x40] sm:$0xff]
    %v61 = vld [vmem:[#allocation4 + $0x48] sm:$0xff]
    %v62 = vld [vmem:[#allocation4 + $0x50] sm:$0xff]
    %v63 = vld [vmem:[#allocation4 + $0x58] sm:$0xff]
    %v64 = vld [vmem:[#allocation4 + $0x60] sm:$0xff]
    %v65 = vld [vmem:[#allocation4 + $0x68] sm:$0xff]
    %v66 = vld [vmem:[#allocation4 + $0x70] sm:$0xff]
    %v67 = vld [vmem:[#allocation4 + $0x78] sm:$0xff]
    %v68 = vld [vmem:[#allocation4 + $0x80] sm:$0xff]
    %v69 = vld [vmem:[#allocation4 + $0x88] sm:$0xff]
    %v70 = vld [vmem:[#allocation4 + $0x90] sm:$0xff]
    %v71 = vld [vmem:[#allocation4 + $0x98] sm:$0xff]
    %v72 = vld [vmem:[#allocation4 + $0xa0] sm:$0xff]
    %v73 = vld [vmem:[#allocation4 + $0xa8] sm:$0xff]
    %v74 = vld [vmem:[#allocation4 + $0xb0] sm:$0xff]
    %v75 = vld [vmem:[#allocation4 + $0xb8] sm:$0xff]
    %v76 = vld [vmem:[#allocation6] sm:$0x3f]
    %v78 = vlaneseq
    %v79 = vshrl.u32 %v78, 7
    %v80 = vsub.s32 0, %v79
    %v81 = vrot.slane %v76, %v80
    %v82 = vlaneseq
    %v83 = vshrl.u32 %v82, 7
    %v84 = vsub.s32 1, %v83
    %v85 = vrot.slane %v76, %v84
    %v86 = vlaneseq
    %v87 = vshrl.u32 %v86, 7
    %v88 = vsub.s32 2, %v87
    %v89 = vrot.slane %v76, %v88
    %v90 = vlaneseq
    %v91 = vshrl.u32 %v90, 7
    %v92 = vsub.s32 3, %v91
    %v93 = vrot.slane %v76, %v92
    %v94 = vlaneseq
    %v95 = vshrl.u32 %v94, 7
    %v96 = vsub.s32 4, %v95
    %v97 = vrot.slane %v76, %v96
    %v98 = vlaneseq
    %v99 = vshrl.u32 %v98, 7
    %v100 = vsub.s32 5, %v99
    %v101 = vrot.slane %v76, %v100
    %vm108 = vcmask 261120
    %v110 = vsel %vm108, %v51, 0
    %112 = vmatprep.subr.mxu0 0.0
    %113 = vmatpush1.msra.mxu0 0.0
    %114 = vmatprep.subr.mxu0 0.0
    %115 = vmatpush1.msra.mxu0 0.0
    %116 = vmatprep.subr.mxu0 0.0
    %117 = vmatpush1.msra.mxu0 0.0
    %118 = vmatprep.subr.mxu0 0.0
    %119 = vmatpush1.msra.mxu0 0.0
    %120 = vmatprep.subr.mxu0 0.0
    %121 = vmatpush1.msra.mxu0 0.0
    %122 = vmatprep.subr.mxu0 0.0
    %123 = vmatpush1.msra.mxu0 0.0
    %124 = vmatprep.subr.mxu0 0.0
    %125 = vmatpush1.msra.mxu0 0.0
    %126 = vmatprep.subr.mxu0 0.0
    %127 = vmatpush1.msra.mxu0 0.0
    %128 = vmatprep.subr.mxu0 0.0
    %129 = vmatpush1.msra.mxu0 0.0
    %130 = vmatprep.subr.mxu0 0.0
    %131 = vmatpush1.msra.mxu0 0.0
    %132 = vmatprep.subr.mxu0 0.0
    %133 = vmatpush1.msra.mxu0 0.0
    %134 = vmatprep.subr.mxu0 0.0
    %135 = vmatpush1.msra.mxu0 0.0
    %136 = vmatprep.subr.mxu0 %v71
    %137 = vmatpush1.msra.mxu0 %v70
    %138 = vmatprep.subr.mxu0 %v65
    %139 = vmatpush1.msra.mxu0 %v64
    %140 = vmatprep.subr.mxu0 %v59
    %141 = vmatpush1.msra.mxu0 %v58
    %142 = vmatprep.subr.mxu0 %v53
    %143 = vmatpush1.msra.mxu0 %v52
    %144 = vmatprep.subr.mxu0 0.0
    %145 = vmatpush2.msra.mxu0 0.0
    %146 = vmatprep.subr.mxu0 0.0
    %147 = vmatpush2.msra.mxu0 0.0
    %148 = vmatprep.subr.mxu0 0.0
    %149 = vmatpush2.msra.mxu0 0.0
    %150 = vmatprep.subr.mxu0 0.0
    %151 = vmatpush2.msra.mxu0 0.0
    %152 = vmatprep.subr.mxu0 0.0
    %153 = vmatpush2.msra.mxu0 0.0
    %154 = vmatprep.subr.mxu0 0.0
    %155 = vmatpush2.msra.mxu0 0.0
    %156 = vmatprep.subr.mxu0 0.0
    %157 = vmatpush2.msra.mxu0 0.0
    %158 = vmatprep.subr.mxu0 0.0
    %159 = vmatpush2.msra.mxu0 0.0
    %160 = vmatprep.subr.mxu0 0.0
    %161 = vmatpush2.msra.mxu0 0.0
    %162 = vmatprep.subr.mxu0 0.0
    %163 = vmatpush2.msra.mxu0 0.0
    %164 = vmatprep.subr.mxu0 0.0
    %165 = vmatpush2.msra.mxu0 0.0
    %166 = vmatprep.subr.mxu0 0.0
    %167 = vmatpush2.msra.mxu0 0.0
    %168 = vmatprep.subr.mxu0 0.0
    %169 = vmatpush2.msra.mxu0 0.0
    %170 = vmatprep.subr.mxu0 0.0
    %171 = vmatpush2.msra.mxu0 0.0
    %172 = vmatprep.subr.mxu0 0.0
    %173 = vmatpush2.msra.mxu0 0.0
    %174 = vmatprep.subr.mxu0 0.0
    %175 = vmatpush2.msra.mxu0 0.0
    %176 = vmatprep.mubr.f32.mxu0 0.0
    %177 = vmatmul.mubr.f32.gmra.mxu0 %v110
    %v178 = vpop.f32.mrf.mxu0
    %v179 = vadd.f32 %v81, %v178
    %v180 = vpop.f32.mrf.mxu0
    %v181 = vadd.f32 %v85, %v180
    %182 = vdwg.mxu0
    %183 = vmatprep.subr.mxu0 0.0
    %184 = vmatpush1.msra.mxu0 0.0
    %185 = vmatprep.subr.mxu0 0.0
    %186 = vmatpush1.msra.mxu0 0.0
    %187 = vmatprep.subr.mxu0 0.0
    %188 = vmatpush1.msra.mxu0 0.0
    %189 = vmatprep.subr.mxu0 0.0
    %190 = vmatpush1.msra.mxu0 0.0
    %191 = vmatprep.subr.mxu0 0.0
    %192 = vmatpush1.msra.mxu0 0.0
    %193 = vmatprep.subr.mxu0 0.0
    %194 = vmatpush1.msra.mxu0 0.0
    %195 = vmatprep.subr.mxu0 0.0
    %196 = vmatpush1.msra.mxu0 0.0
    %197 = vmatprep.subr.mxu0 0.0
    %198 = vmatpush1.msra.mxu0 0.0
    %199 = vmatprep.subr.mxu0 0.0
    %200 = vmatpush1.msra.mxu0 0.0
    %201 = vmatprep.subr.mxu0 0.0
    %202 = vmatpush1.msra.mxu0 0.0
    %203 = vmatprep.subr.mxu0 0.0
    %204 = vmatpush1.msra.mxu0 0.0
    %205 = vmatprep.subr.mxu0 0.0
    %206 = vmatpush1.msra.mxu0 0.0
    %207 = vmatprep.subr.mxu0 %v73
    %208 = vmatpush1.msra.mxu0 %v72
    %209 = vmatprep.subr.mxu0 %v67
    %210 = vmatpush1.msra.mxu0 %v66
    %211 = vmatprep.subr.mxu0 %v61
    %212 = vmatpush1.msra.mxu0 %v60
    %213 = vmatprep.subr.mxu0 %v55
    %214 = vmatpush1.msra.mxu0 %v54
    %215 = vmatprep.subr.mxu0 0.0
    %216 = vmatpush2.msra.mxu0 0.0
    %217 = vmatprep.subr.mxu0 0.0
    %218 = vmatpush2.msra.mxu0 0.0
    %219 = vmatprep.subr.mxu0 0.0
    %220 = vmatpush2.msra.mxu0 0.0
    %221 = vmatprep.subr.mxu0 0.0
    %222 = vmatpush2.msra.mxu0 0.0
    %223 = vmatprep.subr.mxu0 0.0
    %224 = vmatpush2.msra.mxu0 0.0
    %225 = vmatprep.subr.mxu0 0.0
    %226 = vmatpush2.msra.mxu0 0.0
    %227 = vmatprep.subr.mxu0 0.0
    %228 = vmatpush2.msra.mxu0 0.0
    %229 = vmatprep.subr.mxu0 0.0
    %230 = vmatpush2.msra.mxu0 0.0
    %231 = vmatprep.subr.mxu0 0.0
    %232 = vmatpush2.msra.mxu0 0.0
    %233 = vmatprep.subr.mxu0 0.0
    %234 = vmatpush2.msra.mxu0 0.0
    %235 = vmatprep.subr.mxu0 0.0
    %236 = vmatpush2.msra.mxu0 0.0
    %237 = vmatprep.subr.mxu0 0.0
    %238 = vmatpush2.msra.mxu0 0.0
    %239 = vmatprep.subr.mxu0 0.0
    %240 = vmatpush2.msra.mxu0 0.0
    %241 = vmatprep.subr.mxu0 0.0
    %242 = vmatpush2.msra.mxu0 0.0
    %243 = vmatprep.subr.mxu0 0.0
    %244 = vmatpush2.msra.mxu0 0.0
    %245 = vmatprep.subr.mxu0 0.0
    %246 = vmatpush2.msra.mxu0 0.0
    %247 = vmatprep.mubr.f32.mxu0 0.0
    %248 = vmatmul.mubr.f32.gmra.mxu0 %v110
    %v249 = vpop.f32.mrf.mxu0
    %v250 = vadd.f32 %v89, %v249
    %v251 = vpop.f32.mrf.mxu0
    %v252 = vadd.f32 %v93, %v251
    %253 = vdwg.mxu0
    %254 = vmatprep.subr.mxu0 0.0
    %255 = vmatpush1.msra.mxu0 0.0
    %256 = vmatprep.subr.mxu0 0.0
    %257 = vmatpush1.msra.mxu0 0.0
    %258 = vmatprep.subr.mxu0 0.0
    %259 = vmatpush1.msra.mxu0 0.0
    %260 = vmatprep.subr.mxu0 0.0
    %261 = vmatpush1.msra.mxu0 0.0
    %262 = vmatprep.subr.mxu0 0.0
    %263 = vmatpush1.msra.mxu0 0.0
    %264 = vmatprep.subr.mxu0 0.0
    %265 = vmatpush1.msra.mxu0 0.0
    %266 = vmatprep.subr.mxu0 0.0
    %267 = vmatpush1.msra.mxu0 0.0
    %268 = vmatprep.subr.mxu0 0.0
    %269 = vmatpush1.msra.mxu0 0.0
    %270 = vmatprep.subr.mxu0 0.0
    %271 = vmatpush1.msra.mxu0 0.0
    %272 = vmatprep.subr.mxu0 0.0
    %273 = vmatpush1.msra.mxu0 0.0
    %274 = vmatprep.subr.mxu0 0.0
    %275 = vmatpush1.msra.mxu0 0.0
    %276 = vmatprep.subr.mxu0 0.0
    %277 = vmatpush1.msra.mxu0 0.0
    %278 = vmatprep.subr.mxu0 %v75
    %279 = vmatpush1.msra.mxu0 %v74
    %280 = vmatprep.subr.mxu0 %v69
    %281 = vmatpush1.msra.mxu0 %v68
    %282 = vmatprep.subr.mxu0 %v63
    %283 = vmatpush1.msra.mxu0 %v62
    %284 = vmatprep.subr.mxu0 %v57
    %285 = vmatpush1.msra.mxu0 %v56
    %286 = vmatprep.subr.mxu0 0.0
    %287 = vmatpush2.msra.mxu0 0.0
    %288 = vmatprep.subr.mxu0 0.0
    %289 = vmatpush2.msra.mxu0 0.0
    %290 = vmatprep.subr.mxu0 0.0
    %291 = vmatpush2.msra.mxu0 0.0
    %292 = vmatprep.subr.mxu0 0.0
    %293 = vmatpush2.msra.mxu0 0.0
    %294 = vmatprep.subr.mxu0 0.0
    %295 = vmatpush2.msra.mxu0 0.0
    %296 = vmatprep.subr.mxu0 0.0
    %297 = vmatpush2.msra.mxu0 0.0
    %298 = vmatprep.subr.mxu0 0.0
    %299 = vmatpush2.msra.mxu0 0.0
    %300 = vmatprep.subr.mxu0 0.0
    %301 = vmatpush2.msra.mxu0 0.0
    %302 = vmatprep.subr.mxu0 0.0
    %303 = vmatpush2.msra.mxu0 0.0
    %304 = vmatprep.subr.mxu0 0.0
    %305 = vmatpush2.msra.mxu0 0.0
    %306 = vmatprep.subr.mxu0 0.0
    %307 = vmatpush2.msra.mxu0 0.0
    %308 = vmatprep.subr.mxu0 0.0
    %309 = vmatpush2.msra.mxu0 0.0
    %310 = vmatprep.subr.mxu0 0.0
    %311 = vmatpush2.msra.mxu0 0.0
    %312 = vmatprep.subr.mxu0 0.0
    %313 = vmatpush2.msra.mxu0 0.0
    %314 = vmatprep.subr.mxu0 0.0
    %315 = vmatpush2.msra.mxu0 0.0
    %316 = vmatprep.subr.mxu0 0.0
    %317 = vmatpush2.msra.mxu0 0.0
    %318 = vmatprep.mubr.f32.mxu0 0.0
    %319 = vmatmul.mubr.f32.gmra.mxu0 %v110
    %v320 = vpop.f32.mrf.mxu0
    %v321 = vadd.f32 %v97, %v320
    %v322 = vpop.f32.mrf.mxu0
    %v323 = vadd.f32 %v101, %v322
    %324 = vdwg.mxu0
    %v325 = vxor.u32 %v179, 2147483648
    %v326 = vxor.u32 %v181, 2147483648
    %v327 = vxor.u32 %v250, 2147483648
    %v328 = vxor.u32 %v252, 2147483648
    %v329 = vxor.u32 %v321, 2147483648
    %v330 = vxor.u32 %v323, 2147483648
    %v331 = vmul.f32 %v325, 1.442695
    %v332 = vpow.pop %v331
    %v333 = vmul.f32 %v326, 1.442695
    %v334 = vpow.pop %v333
    %v335 = vmul.f32 %v327, 1.442695
    %v336 = vpow.pop %v335
    %v337 = vmul.f32 %v328, 1.442695
    %v338 = vpow.pop %v337
    %v339 = vmul.f32 %v329, 1.442695
    %v340 = vpow.pop %v339
    %v341 = vmul.f32 %v330, 1.442695
    %v342 = vpow.pop %v341
    %v343 = vadd.f32 %v332, 1.0
    %v344 = vadd.f32 %v334, 1.0
    %v345 = vadd.f32 %v336, 1.0
    %v346 = vadd.f32 %v338, 1.0
    %v347 = vadd.f32 %v340, 1.0
    %v348 = vadd.f32 %v342, 1.0
    %v349 = vrcp.pop %v343
    %v350 = vmul.f32 1.0, %v349
    %v351 = vrcp.pop %v344
    %v352 = vmul.f32 1.0, %v351
    %v353 = vrcp.pop %v345
    %v354 = vmul.f32 1.0, %v353
    %v355 = vrcp.pop %v346
    %v356 = vmul.f32 1.0, %v355
    %v357 = vrcp.pop %v347
    %v358 = vmul.f32 1.0, %v357
    %v359 = vrcp.pop %v348
    %v360 = vmul.f32 1.0, %v359
    %v367 = vcombine.low %v350, %v352
    %v368 = vcombine.low %v354, %v356
    %v370 = vunpack.c.l.s4 1983009808
    %v371 = vunpack.c.0.s8 %v370
    %v372 = vlaneseq
    %v373 = vshrl.u32 %v372, 7
    %v374 = vsub.s32 %v371, %v373
    %v375 = vrot.slane %v367, %v374
    %v377 = vunpack.c.l.s4 1983009808
    %v378 = vunpack.c.0.s8 %v377
    %v379 = vlaneseq
    %v380 = vshrl.u32 %v379, 7
    %v381 = vsub.s32 %v378, %v380
    %v382 = vrot.slane %v368, %v381
    %v383 = vcombine.low %v375, %v382
    %v384 = vcombine.low %v358, %v360
    %v386 = vunpack.c.l.s4 1983009808
    %v387 = vunpack.c.0.s8 %v386
    %v388 = vlaneseq
    %v389 = vshrl.u32 %v388, 7
    %v390 = vsub.s32 %v387, %v389
    %v391 = vrot.slane %v384, %v390
    %394 = vst [vmem:[%s3] sm:$0xff] %v383
    %395 = vst [vmem:[%s3 + $0x8] sm:$0xf] %v391
    // Predicated region
    $region26: #{toy_decoder_forward.1} parent=1 // pred_check
      _
    $region27: #{toy_decoder_forward.1} parent=1 // pred_check_branch
      %397 = sbr.rel (0) target = $region29
    $region28: #{toy_decoder_forward.1} parent=1 // pred_region
      _
    $region29: #{toy_decoder_forward.1} parent=1 // pred_fallthru
      _
    // Predicated region
    $region30: #{toy_decoder_forward.1} parent=1 // pred_check
      _
    $region31: #{toy_decoder_forward.1} parent=1 // pred_check_branch
      %399 = sbr.rel (0) target = $region33
    $region32: #{toy_decoder_forward.1} parent=1 // pred_region
      _
    $region33: #{toy_decoder_forward.1} parent=1 // pred_fallthru
      _
    %400 = vsyncpa [#allocation3], 1
    %401 = vsyncpa [#allocation5], 1

</llo_original>
